<compile_context>
chip_gen: v7x
topology: tpu7x:2x2x1
jax: 0.10.0
libtpu: 0.0.40
codegen_flags: <defaults>
</compile_context>

<pallas_src>
import jax
import jax.numpy as jnp
from jax.experimental import pallas as pl
from jax.experimental.pallas import tpu as pltpu


def _round_up(x, m):
    return ((x + m - 1) // m) * m


def _radpolytrig_kernel(nm_ref, a_ref, b_ref, c_ref, wt_ref, bias_ref, out_ref):
    # nm_ref:   (2, tm)        row 0 = norms, row 1 = edge mask (f32 0/1)
    # a/b/c:    (K_tot, 1)     per-level basis params concatenated along K
    # wt_ref:   (Rout_tot, K_tot) block-diagonal fused weights
    # bias_ref: (Rout_tot, 1)
    # out_ref:  (Rout_tot, tm) lane-dense output (edges on lanes)
    nm = nm_ref[...]
    norms = nm[0:1, :]                        # (1, tm)
    mask = nm[1:2, :]                         # (1, tm)
    a = a_ref[...]                            # (K_tot, 1)
    b = b_ref[...]
    c = c_ref[...]

    cn = c * norms                            # (K_tot, tm) via broadcast
    den = 1.0 + cn * cn + 1e-16               # >= 1 (eps is a no-op in f32)
    val = b * pl.reciprocal(den, approx=False) + a
    # where (not multiply): masked edges stay exactly 0 even if norms has
    # Inf/NaN sentinels there (matches torch.where semantics).
    rad = jnp.where(mask != 0.0, val, 0.0)    # (K_tot, tm)

    # One MXU matmul covering all levels and all l; bias broadcast over lanes.
    out_ref[...] = (
        jnp.dot(wt_ref[...], rad, preferred_element_type=jnp.float32)
        + bias_ref[...]
    ).astype(out_ref.dtype)


def _choose_tile_m(M, tile_m, target_grid_steps):
    """Lane-tile size: big enough to amortise per-step cost, small enough that
    the single 'parallel' grid axis has >=2 (target 8) steps for v7x megacore."""
    tile_m = max(128, (tile_m // 128) * 128)
    m128 = _round_up(M, 128)
    tile_m = min(tile_m, m128)
    if target_grid_steps and target_grid_steps > 1 and m128 >= 2 * 1024:
        steps = target_grid_steps if m128 >= target_grid_steps * 1024 else 2
        cap = max(1024, _round_up(pl.cdiv(m128, steps), 128))
        tile_m = min(tile_m, cap)
    return tile_m


def _build_fused_weights(level_params):
    """Concatenate per-level basis params along K and fold every (level, l)
    linear layer into one block-diagonal weight matrix.

    Row r of the fused output = row_offset[level] + l*2*C + part*C + channel,
    matching torch's `out.view(..., C, 2).permute(...)` ordering.
    """
    a_cols, b_cols, c_cols, w_blocks, bias_rows, meta = [], [], [], [], [], []
    row_off = 0
    for p in level_params:
        a = jnp.asarray(p["a"], jnp.float32).reshape(-1, 1)      # (K, 1)
        b = jnp.asarray(p["b"], jnp.float32).reshape(-1, 1)
        c = jnp.asarray(p["c"], jnp.float32).reshape(-1, 1)
        K = a.shape[0]
        W = jnp.asarray(p["W"], jnp.float32)                     # (L, K, 2C)
        bias = jnp.asarray(p["bias"], jnp.float32)               # (L, 1, 2C)
        L = W.shape[0]
        C = p["num_channels"]
        assert W.shape == (L, K, 2 * C) and bias.shape == (L, 1, 2 * C)
        Rout = L * 2 * C
        # torch output column j = 2*channel + part  ->  fused row l*2C + part*C + ch
        W_t = jnp.transpose(W.reshape(L, K, C, 2), (0, 3, 2, 1)).reshape(Rout, K)
        bias_t = jnp.transpose(bias.reshape(L, C, 2), (0, 2, 1)).reshape(Rout, 1)
        a_cols.append(a); b_cols.append(b); c_cols.append(c)
        w_blocks.append(W_t); bias_rows.append(bias_t)
        meta.append((row_off, L, C))
        row_off += Rout
    a_cat = jnp.concatenate(a_cols, axis=0)
    b_cat = jnp.concatenate(b_cols, axis=0)
    c_cat = jnp.concatenate(c_cols, axis=0)
    W_block = jax.scipy.linalg.block_diag(*w_blocks)             # (Rout_tot, K_tot)
    bias_cat = jnp.concatenate(bias_rows, axis=0)                # (Rout_tot, 1)
    return a_cat, b_cat, c_cat, W_block, bias_cat, meta


def radial_filters_forward_raw(norms, base_mask, level_params, *, tile_m=8192,
                               target_grid_steps=8, out_dtype=jnp.float32):
    """Fused RadialFilters forward, lane-dense output.

    Returns (out, meta, M) where out is (Rout_tot, M_pad) with edges on the
    lane axis; meta[v] = (row_offset, L_v, C_v).  Padded tail columns
    [M:M_pad] equal the bias (mask there is 0) and must be ignored by
    consumers.  Use this directly (fusing the relayout into the consumer)
    to avoid an extra full HBM pass over the output.
    """
    B, N1, N2 = norms.shape
    M = B * N1 * N2

    a_cat, b_cat, c_cat, W_block, bias_cat, meta = _build_fused_weights(level_params)
    Rout_tot, K_tot = W_block.shape

    tile = _choose_tile_m(M, tile_m, target_grid_steps)
    M_pad = _round_up(M, tile)

    # Pack norms + mask once into a single (2, M_pad) f32 array (one DMA/step).
    norms_flat = norms.reshape(M).astype(jnp.float32)
    mask_flat = (base_mask != 0).reshape(M).astype(jnp.float32)
    nm = jnp.stack([norms_flat, mask_flat], axis=0)
    if M_pad != M:
        nm = jnp.pad(nm, ((0, 0), (0, M_pad - M)))

    cost = pl.CostEstimate(
        flops=2 * K_tot * Rout_tot * M_pad,
        transcendentals=0,
        bytes_accessed=4 * ((2 + Rout_tot) * M_pad
                            + Rout_tot * (K_tot + 1) + 3 * K_tot),
    )

    out_t = pl.pallas_call(
        _radpolytrig_kernel,
        out_shape=jax.ShapeDtypeStruct((Rout_tot, M_pad), out_dtype),
        grid_spec=pltpu.PrefetchScalarGridSpec(
            num_scalar_prefetch=0,
            grid=(M_pad // tile,),
            in_specs=[
                pl.BlockSpec((2, tile), lambda i: (0, i)),        # norms+mask
                pl.BlockSpec((K_tot, 1), lambda i: (0, 0)),       # a (all levels)
                pl.BlockSpec((K_tot, 1), lambda i: (0, 0)),       # b
                pl.BlockSpec((K_tot, 1), lambda i: (0, 0)),       # c
                pl.BlockSpec((Rout_tot, K_tot), lambda i: (0, 0)),  # W block-diag
                pl.BlockSpec((Rout_tot, 1), lambda i: (0, 0)),      # bias
            ],
            out_specs=pl.BlockSpec((Rout_tot, tile), lambda i: (0, i)),
        ),
        compiler_params=pltpu.CompilerParams(
            dimension_semantics=("parallel",)),
        cost_estimate=cost,
    )(nm, a_cat, b_cat, c_cat, W_block, bias_cat)

    return out_t, meta, M


def radial_filters_forward(norms, base_mask, level_params, *, tile_m=8192,
                           target_grid_steps=8, out_dtype=jnp.float32):
    """RadialFilters.forward: list (per CG level) of dicts {(l,l): (2,B,N,N,C)}.

    The final relayout into the module-faithful (2,B,N,N,C) layout (C=4
    innermost can never be lane-dense on TPU) is done here, outside the
    kernel; downstream consumers that can accept the lane-dense slab should
    call radial_filters_forward_raw instead and skip this HBM pass.
    """
    B, N1, N2 = norms.shape
    out_t, meta, M = radial_filters_forward_raw(
        norms, base_mask, level_params, tile_m=tile_m,
        target_grid_steps=target_grid_steps, out_dtype=out_dtype)

    results = []
    for (row_off, L, C) in meta:
        Rout = L * 2 * C
        blk = out_t[row_off:row_off + Rout, :M].reshape(L, 2, C, M)
        # (L,2,C,M) -> (L,2,M,C) -> (L,2,B,N,N,C): the single remaining full
        # HBM read+write of the output (accepted; fuse into consumer if possible).
        blk = jnp.transpose(blk, (0, 1, 3, 2)).reshape(L, 2, B, N1, N2, C)
        results.append({(l, l): blk[l] for l in range(L)})
    return results


def rad_poly_trig_reference(norms, edge_mask, a, b, c, W, bias, num_channels):
    """Pure-JAX reference mirroring the PyTorch forward (one level)."""
    B, N1, N2 = norms.shape
    L = W.shape[0]
    n = norms[..., None].astype(jnp.float32)                       # (B,N,N,1)
    m = (edge_mask != 0)[..., None]                                # (B,N,N,1)
    rad = jnp.where(m, b / (1.0 + (c * n) ** 2 + 1e-16) + a, 0.0)  # (B,N,N,2NB)
    outs = {}
    for l in range(L):
        y = rad @ W[l] + bias[l, 0]                                # (B,N,N,2C)
        y = y.reshape(B, N1, N2, num_channels, 2)
        outs[(l, l)] = jnp.transpose(y, (4, 0, 1, 2, 3))           # (2,B,N,N,C)
    return outs


if __name__ == "__main__":
    # RadialFilters hyperparameters (small, consistent with the module).
    num_basis_fn = 8
    K = 2 * num_basis_fn                    # 16
    max_zf = [2, 1]                         # per-level max weight
    num_channels_out = [4, 4]
    num_levels = 2

    # norms / edge_mask of shape (B, N_node, N_node);
    # M = B*N*N = 200 also exercises the lane-padding path (pad to 256).
    B, N = 2, 10

    key = jax.random.PRNGKey(0)
    k_n, k_m, k_p = jax.random.split(key, 3)
    norms = jax.random.uniform(k_n, (B, N, N), dtype=jnp.float32) * 5.0
    edge_mask = (jax.random.uniform(k_m, (B, N, N)) > 0.2).astype(jnp.int32)

    level_params = []
    for level in range(num_levels):
        L = max_zf[level] + 1
        C = num_channels_out[level]
        k_p, k_a, k_b, k_c, k_w, k_bias = jax.random.split(k_p, 6)
        level_params.append(dict(
            a=jax.random.normal(k_a, (1, K), dtype=jnp.float32),
            b=jax.random.normal(k_b, (1, K), dtype=jnp.float32),
            c=jax.random.normal(k_c, (1, K), dtype=jnp.float32),
            # W is the transpose of torch's Linear.weight: (L, in=2*NB, out=2*C)
            W=jax.random.normal(k_w, (L, K, 2 * C), dtype=jnp.float32) * 0.1,
            bias=jax.random.normal(k_bias, (L, 1, 2 * C), dtype=jnp.float32) * 0.1,
            num_channels=C,
        ))

    # Reference values (pure JAX).
    ref_levels = [
        rad_poly_trig_reference(norms, edge_mask, p["a"], p["b"], p["c"],
                                p["W"], p["bias"], p["num_channels"])
        for p in level_params
    ]

    # Run with the default (single-step grid at this M) and with a small tile
    # to also exercise the multi-step grid + padded-tail path.
    for tm in (8192, 128):
        results = radial_filters_forward(norms, edge_mask, level_params, tile_m=tm)
        jax.block_until_ready(results)
        for level, (params, got_level) in enumerate(zip(level_params, results)):
            L = max_zf[level] + 1
            C = params["num_channels"]
            for l in range(L):
                got, want = got_level[(l, l)], ref_levels[level][(l, l)]
                assert got.shape == (2, B, N, N, C), got.shape
                assert jnp.allclose(got, want, atol=1e-5, rtol=1e-5), \
                    f"mismatch at tile_m={tm}, level={level}, l={l}"

    print("KERNEL_OK")
</pallas_src>

<mosaic_0001>
module attributes {stable_mosaic.version = 11 : i64} {
  func.func @_radpolytrig_kernel(%arg0: i32, %arg1: memref<2x256xf32, #tpu.memory_space<vmem>>, %arg2: memref<32x1xf32, #tpu.memory_space<vmem>>, %arg3: memref<32x1xf32, #tpu.memory_space<vmem>>, %arg4: memref<32x1xf32, #tpu.memory_space<vmem>>, %arg5: memref<40x32xf32, #tpu.memory_space<vmem>>, %arg6: memref<40x1xf32, #tpu.memory_space<vmem>>, %arg7: memref<40x256xf32, #tpu.memory_space<vmem>>) attributes {dimension_semantics = [#tpu.dimension_semantics<parallel>], iteration_bounds = array<i64: 1>, scalar_prefetch = 0 : i64, scratch_operands = 0 : i64, tpu.core_type = #tpu.core_type<tc>, window_params = [{transform_indices = @transform_0, window_bounds = array<i64: 2, 256>}, {pipeline_mode = #tpu.pipeline_mode<synchronous>, transform_indices = @transform_1, window_bounds = array<i64: 32, 1>}, {pipeline_mode = #tpu.pipeline_mode<synchronous>, transform_indices = @transform_2, window_bounds = array<i64: 32, 1>}, {pipeline_mode = #tpu.pipeline_mode<synchronous>, transform_indices = @transform_3, window_bounds = array<i64: 32, 1>}, {pipeline_mode = #tpu.pipeline_mode<synchronous>, transform_indices = @transform_4, window_bounds = array<i64: 40, 32>}, {pipeline_mode = #tpu.pipeline_mode<synchronous>, transform_indices = @transform_5, window_bounds = array<i64: 40, 1>}, {transform_indices = @transform_6, window_bounds = array<i64: 40, 256>}]} {
    %c0 = arith.constant 0 : index
    %c0_0 = arith.constant 0 : index
    %0 = vector.load %arg1[%c0, %c0_0] : memref<2x256xf32, #tpu.memory_space<vmem>>, vector<2x256xf32>
    %1 = vector.extract_strided_slice %0 {offsets = [0, 0], sizes = [1, 256], strides = [1, 1]} : vector<2x256xf32> to vector<1x256xf32>
    %2 = vector.extract_strided_slice %0 {offsets = [1, 0], sizes = [1, 256], strides = [1, 1]} : vector<2x256xf32> to vector<1x256xf32>
    %c0_1 = arith.constant 0 : index
    %c0_2 = arith.constant 0 : index
    %3 = vector.load %arg2[%c0_1, %c0_2] : memref<32x1xf32, #tpu.memory_space<vmem>>, vector<32x1xf32>
    %c0_3 = arith.constant 0 : index
    %c0_4 = arith.constant 0 : index
    %4 = vector.load %arg3[%c0_3, %c0_4] : memref<32x1xf32, #tpu.memory_space<vmem>>, vector<32x1xf32>
    %c0_5 = arith.constant 0 : index
    %c0_6 = arith.constant 0 : index
    %5 = vector.load %arg4[%c0_5, %c0_6] : memref<32x1xf32, #tpu.memory_space<vmem>>, vector<32x1xf32>
    %6 = vector.broadcast %5 : vector<32x1xf32> to vector<32x256xf32>
    %7 = vector.broadcast %1 : vector<1x256xf32> to vector<32x256xf32>
    %8 = arith.mulf %6, %7 : vector<32x256xf32>
    %9 = arith.mulf %8, %8 : vector<32x256xf32>
    %cst = arith.constant 1.000000e+00 : f32
    %10 = vector.broadcast %cst : f32 to vector<32x256xf32>
    %11 = arith.addf %10, %9 : vector<32x256xf32>
    %cst_7 = arith.constant 1.000000e-16 : f32
    %12 = vector.broadcast %cst_7 : f32 to vector<32x256xf32>
    %13 = arith.addf %11, %12 : vector<32x256xf32>
    %14 = tpu.reciprocal %13 : vector<32x256xf32> -> vector<32x256xf32>
    %15 = vector.broadcast %4 : vector<32x1xf32> to vector<32x256xf32>
    %16 = arith.mulf %15, %14 : vector<32x256xf32>
    %17 = vector.broadcast %3 : vector<32x1xf32> to vector<32x256xf32>
    %18 = arith.addf %16, %17 : vector<32x256xf32>
    %cst_8 = arith.constant 0.000000e+00 : f32
    %19 = vector.broadcast %cst_8 : f32 to vector<1x256xf32>
    %20 = arith.cmpf one, %2, %19 : vector<1x256xf32>
    %cst_9 = arith.constant 0.000000e+00 : f32
    %21 = vector.shape_cast %20 : vector<1x256xi1> to vector<1x256xi1>
    %22 = vector.broadcast %21 : vector<1x256xi1> to vector<32x256xi1>
    %23 = vector.broadcast %cst_9 : f32 to vector<32x256xf32>
    %24 = arith.select %22, %18, %23 : vector<32x256xi1>, vector<32x256xf32>
    %c0_10 = arith.constant 0 : index
    %c0_11 = arith.constant 0 : index
    %25 = vector.load %arg5[%c0_10, %c0_11] : memref<40x32xf32, #tpu.memory_space<vmem>>, vector<40x32xf32>
    %cst_12 = arith.constant dense<0.000000e+00> : vector<40x256xf32>
    %26 = tpu.matmul %25, %24, %cst_12 {dimension_numbers = #tpu.dot_dimension_numbers<[1], [0], [0], [1], [0, 0, 1, 1], [], []>} : vector<40x32xf32>, vector<32x256xf32>, vector<40x256xf32> -> vector<40x256xf32>
    %c0_13 = arith.constant 0 : index
    %c0_14 = arith.constant 0 : index
    %27 = vector.load %arg6[%c0_13, %c0_14] : memref<40x1xf32, #tpu.memory_space<vmem>>, vector<40x1xf32>
    %28 = vector.broadcast %27 : vector<40x1xf32> to vector<40x256xf32>
    %29 = arith.addf %26, %28 : vector<40x256xf32>
    %c0_15 = arith.constant 0 : index
    %c0_16 = arith.constant 0 : index
    %30 = vector.load %arg7[%c0_15, %c0_16] : memref<40x256xf32, #tpu.memory_space<vmem>>, vector<40x256xf32>
    tpu.vector_store %arg7[%c0_15, %c0_16], %29 {strides = array<i32>} : memref<40x256xf32, #tpu.memory_space<vmem>>, vector<40x256xf32>,
    return
  }
  func.func @transform_0(%arg0: i32) -> (i32, i32) {
    %c0_i32 = arith.constant 0 : i32
    %c0_i32_0 = arith.constant 0 : i32
    return %c0_i32, %arg0 : i32, i32
  }
  func.func @transform_1(%arg0: i32) -> (i32, i32) {
    %c0_i32 = arith.constant 0 : i32
    %c0_i32_0 = arith.constant 0 : i32
    %c0_i32_1 = arith.constant 0 : i32
    return %c0_i32, %c0_i32_0 : i32, i32
  }
  func.func @transform_2(%arg0: i32) -> (i32, i32) {
    %c0_i32 = arith.constant 0 : i32
    %c0_i32_0 = arith.constant 0 : i32
    %c0_i32_1 = arith.constant 0 : i32
    return %c0_i32, %c0_i32_0 : i32, i32
  }
  func.func @transform_3(%arg0: i32) -> (i32, i32) {
    %c0_i32 = arith.constant 0 : i32
    %c0_i32_0 = arith.constant 0 : i32
    %c0_i32_1 = arith.constant 0 : i32
    return %c0_i32, %c0_i32_0 : i32, i32
  }
  func.func @transform_4(%arg0: i32) -> (i32, i32) {
    %c0_i32 = arith.constant 0 : i32
    %c0_i32_0 = arith.constant 0 : i32
    %c0_i32_1 = arith.constant 0 : i32
    return %c0_i32, %c0_i32_0 : i32, i32
  }
  func.func @transform_5(%arg0: i32) -> (i32, i32) {
    %c0_i32 = arith.constant 0 : i32
    %c0_i32_0 = arith.constant 0 : i32
    %c0_i32_1 = arith.constant 0 : i32
    return %c0_i32, %c0_i32_0 : i32, i32
  }
  func.func @transform_6(%arg0: i32) -> (i32, i32) {
    %c0_i32 = arith.constant 0 : i32
    %c0_i32_0 = arith.constant 0 : i32
    return %c0_i32, %arg0 : i32, i32
  }
}

</mosaic_0001>

<llo_original>
// kernel: tpu_custom_call.1
$region0: #{tpu_custom_call.1}
  #allocation0 [shape = 'u32[]', space=smem, size = 0x4, offset = 0x4, fixed_abs, tag = 'smem constant byte address 0x4 - core index']
  #allocation1 [shape = 'u32[144,128]{1,0:T(1,128)}', space=vmem, size = 0x12000, scoped, tag = 'internal scratch']
  %s0 = inlined_call_operand.vmem [shape: f32[2,256], index: 0, kind: input, shape index: {}]
  %s1 = inlined_call_operand.vmem [shape: f32[32,1], index: 1, kind: input, shape index: {}]
  %s2 = inlined_call_operand.vmem [shape: f32[32,1], index: 2, kind: input, shape index: {}]
  %s3 = inlined_call_operand.vmem [shape: f32[32,1], index: 3, kind: input, shape index: {}]
  %s4 = inlined_call_operand.vmem [shape: f32[40,32], index: 4, kind: input, shape index: {}]
  %s5 = inlined_call_operand.vmem [shape: f32[40,1], index: 5, kind: input, shape index: {}]
  %s6 = inlined_call_operand.hbm [shape: f32[40,256], index: 6, kind: output, shape index: {}]
  %s7 = sld [smem:[#allocation0]]
  $region34: #{tpu_custom_call.1} parent=0
    _
  %s9 = ssub.s32 1, %s7
  %s10 = scalar_select 0, %s9, %s7
  $region1: #{tpu_custom_call.1} parent=0
    #allocation2 [shape = 'u8[40960]{0}', space=vmem, size = 0xa000, scoped, tag = 'output window, operand 0, single buffered']
    #allocation3 [shape = 's32[1]{0}', space=sflag, size = 0x4, scoped, tag = 'scoped memory for tpu_custom_call.1']
    %11 = vsyncpa [#allocation3], 0
    // Predicated region
    $region2: #{tpu_custom_call.1} parent=1 // pred_check
      _
    $region3: #{tpu_custom_call.1} parent=1 // pred_check_branch
      %13 = sbr.rel (0) target = $region5
    $region4: #{tpu_custom_call.1} parent=1 // pred_region
      _
    $region5: #{tpu_custom_call.1} parent=1 // pred_fallthru
      _
    // Predicated region
    $region6: #{tpu_custom_call.1} parent=1 // pred_check
      _
    $region7: #{tpu_custom_call.1} parent=1 // pred_check_branch
      %15 = sbr.rel (0) target = $region9
    $region8: #{tpu_custom_call.1} parent=1 // pred_region
      _
    $region9: #{tpu_custom_call.1} parent=1 // pred_fallthru
      _
    // Predicated region
    $region10: #{tpu_custom_call.1} parent=1 // pred_check
      _
    $region11: #{tpu_custom_call.1} parent=1 // pred_check_branch
      %17 = sbr.rel (0) target = $region13
    $region12: #{tpu_custom_call.1} parent=1 // pred_region
      _
    $region13: #{tpu_custom_call.1} parent=1 // pred_fallthru
      _
    // Predicated region
    $region14: #{tpu_custom_call.1} parent=1 // pred_check
      _
    $region15: #{tpu_custom_call.1} parent=1 // pred_check_branch
      %19 = sbr.rel (0) target = $region17
    $region16: #{tpu_custom_call.1} parent=1 // pred_region
      _
    $region17: #{tpu_custom_call.1} parent=1 // pred_fallthru
      _
    // Predicated region
    $region18: #{tpu_custom_call.1} parent=1 // pred_check
      _
    $region19: #{tpu_custom_call.1} parent=1 // pred_check_branch
      %21 = sbr.rel (0) target = $region21
    $region20: #{tpu_custom_call.1} parent=1 // pred_region
      _
    $region21: #{tpu_custom_call.1} parent=1 // pred_fallthru
      _
    // Predicated region
    $region22: #{tpu_custom_call.1} parent=1 // pred_check
      _
    $region23: #{tpu_custom_call.1} parent=1 // pred_check_branch
      %23 = sbr.rel (0) target = $region25
    $region24: #{tpu_custom_call.1} parent=1 // pred_region
      _
    $region25: #{tpu_custom_call.1} parent=1 // pred_fallthru
      _
    %v24 = vld [vmem:[%s0] sm:$0xf]
    %v25 = vld [vmem:[%s1] sm:$0xff]
    %v26 = vld [vmem:[%s1 + $0x8] sm:$0xff]
    %v27 = vld [vmem:[%s1 + $0x10] sm:$0xff]
    %v28 = vld [vmem:[%s1 + $0x18] sm:$0xff]
    %v29 = vld [vmem:[%s2] sm:$0xff]
    %v30 = vld [vmem:[%s2 + $0x8] sm:$0xff]
    %v31 = vld [vmem:[%s2 + $0x10] sm:$0xff]
    %v32 = vld [vmem:[%s2 + $0x18] sm:$0xff]
    %v33 = vld [vmem:[%s3] sm:$0xff]
    %v34 = vld [vmem:[%s3 + $0x8] sm:$0xff]
    %v35 = vld [vmem:[%s3 + $0x10] sm:$0xff]
    %v36 = vld [vmem:[%s3 + $0x18] sm:$0xff]
    %38 = vset.pattern.permute.xlu0 0
    %39 = vperm.xlu0 %38, %v33
    %v40 = vpop.permute.xlu0 %39
    %43 = vset.pattern.permute.xlu0 0
    %44 = vperm.xlu0 %43, %v34
    %v45 = vpop.permute.xlu0 %44
    %48 = vset.pattern.permute.xlu0 0
    %49 = vperm.xlu0 %48, %v35
    %v50 = vpop.permute.xlu0 %49
    %53 = vset.pattern.permute.xlu0 0
    %54 = vperm.xlu0 %53, %v36
    %v55 = vpop.permute.xlu0 %54
    %v58 = vlaneseq
    %v59 = vshrl.u32 %v58, 7
    %v60 = vsub.s32 0, %v59
    %v61 = vrot.slane %v24, %v60
    %v62 = vlaneseq
    %v63 = vshrl.u32 %v62, 7
    %v64 = vsub.s32 2, %v63
    %v65 = vrot.slane %v24, %v64
    %v68 = vlaneseq
    %v69 = vshrl.u32 %v68, 7
    %v70 = vsub.s32 0, %v69
    %v71 = vrot.slane %v61, %v70
    %v72 = vlaneseq
    %v73 = vshrl.u32 %v72, 7
    %v74 = vsub.s32 0, %v73
    %v75 = vrot.slane %v65, %v74
    %v76 = vmul.f32 %v40, %v71
    %v77 = vmul.f32 %v40, %v75
    %v78 = vmul.f32 %v45, %v71
    %v79 = vmul.f32 %v45, %v75
    %v80 = vmul.f32 %v50, %v71
    %v81 = vmul.f32 %v50, %v75
    %v82 = vmul.f32 %v55, %v71
    %v83 = vmul.f32 %v55, %v75
    %v84 = vmul.f32 %v76, %v76
    %v85 = vmul.f32 %v77, %v77
    %v86 = vmul.f32 %v78, %v78
    %v87 = vmul.f32 %v79, %v79
    %v88 = vmul.f32 %v80, %v80
    %v89 = vmul.f32 %v81, %v81
    %v90 = vmul.f32 %v82, %v82
    %v91 = vmul.f32 %v83, %v83
    %v92 = vadd.f32 %v84, 1.0
    %v93 = vadd.f32 %v85, 1.0
    %v94 = vadd.f32 %v86, 1.0
    %v95 = vadd.f32 %v87, 1.0
    %v96 = vadd.f32 %v88, 1.0
    %v97 = vadd.f32 %v89, 1.0
    %v98 = vadd.f32 %v90, 1.0
    %v99 = vadd.f32 %v91, 1.0
    %v100 = vadd.f32 %v92, 1e-16
    %v101 = vadd.f32 %v93, 1e-16
    %v102 = vadd.f32 %v94, 1e-16
    %v103 = vadd.f32 %v95, 1e-16
    %v104 = vadd.f32 %v96, 1e-16
    %v105 = vadd.f32 %v97, 1e-16
    %v106 = vadd.f32 %v98, 1e-16
    %v107 = vadd.f32 %v99, 1e-16
    %v108 = vrcp.pop %v100
    %v109 = vrcp.pop %v101
    %v110 = vrcp.pop %v102
    %v111 = vrcp.pop %v103
    %v112 = vrcp.pop %v104
    %v113 = vrcp.pop %v105
    %v114 = vrcp.pop %v106
    %v115 = vrcp.pop %v107
    %117 = vset.pattern.permute.xlu0 0
    %118 = vperm.xlu0 %117, %v29
    %v119 = vpop.permute.xlu0 %118
    %122 = vset.pattern.permute.xlu0 0
    %123 = vperm.xlu0 %122, %v30
    %v124 = vpop.permute.xlu0 %123
    %127 = vset.pattern.permute.xlu0 0
    %128 = vperm.xlu0 %127, %v31
    %v129 = vpop.permute.xlu0 %128
    %132 = vset.pattern.permute.xlu0 0
    %133 = vperm.xlu0 %132, %v32
    %v134 = vpop.permute.xlu0 %133
    %v136 = vmul.f32 %v119, %v108
    %v137 = vmul.f32 %v119, %v109
    %v138 = vmul.f32 %v124, %v110
    %v139 = vmul.f32 %v124, %v111
    %v140 = vmul.f32 %v129, %v112
    %v141 = vmul.f32 %v129, %v113
    %v142 = vmul.f32 %v134, %v114
    %v143 = vmul.f32 %v134, %v115
    %145 = vset.pattern.permute.xlu0 0
    %146 = vperm.xlu0 %145, %v25
    %v147 = vpop.permute.xlu0 %146
    %150 = vset.pattern.permute.xlu0 0
    %151 = vperm.xlu0 %150, %v26
    %v152 = vpop.permute.xlu0 %151
    %155 = vset.pattern.permute.xlu0 0
    %156 = vperm.xlu0 %155, %v27
    %v157 = vpop.permute.xlu0 %156
    %160 = vset.pattern.permute.xlu0 0
    %161 = vperm.xlu0 %160, %v28
    %v162 = vpop.permute.xlu0 %161
    %v164 = vadd.f32 %v136, %v147
    %v165 = vadd.f32 %v137, %v147
    %v166 = vadd.f32 %v138, %v152
    %v167 = vadd.f32 %v139, %v152
    %v168 = vadd.f32 %v140, %v157
    %v169 = vadd.f32 %v141, %v157
    %v170 = vadd.f32 %v142, %v162
    %v171 = vadd.f32 %v143, %v162
    %vm172 = vcmp.ne.f32.partialorder %v24, 0.0
    %v173 = vsel %vm172, 1, 0
    %v174 = vlaneseq
    %v175 = vshrl.u32 %v174, 7
    %v176 = vsub.s32 1, %v175
    %v177 = vrot.slane %v173, %v176
    %v178 = vlaneseq
    %v179 = vshrl.u32 %v178, 7
    %v180 = vsub.s32 3, %v179
    %v181 = vrot.slane %v173, %v180
    %v182 = vlaneseq
    %v183 = vshrl.u32 %v182, 7
    %v184 = vsub.s32 1, %v183
    %v185 = vrot.slane %v177, %v184
    %v186 = vlaneseq
    %v187 = vshrl.u32 %v186, 7
    %v188 = vsub.s32 1, %v187
    %v189 = vrot.slane %v181, %v188
    %vm190 = vcmp.eq.s32.totalorder %v185, 1
    %vm191 = vcmp.eq.s32.totalorder %v189, 1
    %v192 = vsel %vm190, %v164, 0.0
    %v193 = vsel %vm191, %v165, 0.0
    %v194 = vsel %vm190, %v166, 0.0
    %v195 = vsel %vm191, %v167, 0.0
    %v196 = vsel %vm190, %v168, 0.0
    %v197 = vsel %vm191, %v169, 0.0
    %v198 = vsel %vm190, %v170, 0.0
    %v199 = vsel %vm191, %v171, 0.0
    %v200 = vld [vmem:[%s4] sm:$0xff]
    %v201 = vld [vmem:[%s4 + $0x8] sm:$0xff]
    %v202 = vld [vmem:[%s4 + $0x10] sm:$0xff]
    %v203 = vld [vmem:[%s4 + $0x18] sm:$0xff]
    %v204 = vld [vmem:[%s4 + $0x20] sm:$0xff]
    %v205 = vld [vmem:[%s5] sm:$0xff]
    %v206 = vld [vmem:[%s5 + $0x8] sm:$0xff]
    %v207 = vld [vmem:[%s5 + $0x10] sm:$0xff]
    %v208 = vld [vmem:[%s5 + $0x18] sm:$0xff]
    %v209 = vld [vmem:[%s5 + $0x20] sm:$0xff]
    %211 = vset.pattern.permute.xlu0 0
    %212 = vperm.xlu0 %211, %v205
    %v213 = vpop.permute.xlu0 %212
    %216 = vset.pattern.permute.xlu0 0
    %217 = vperm.xlu0 %216, %v206
    %v218 = vpop.permute.xlu0 %217
    %221 = vset.pattern.permute.xlu0 0
    %222 = vperm.xlu0 %221, %v207
    %v223 = vpop.permute.xlu0 %222
    %226 = vset.pattern.permute.xlu0 0
    %227 = vperm.xlu0 %226, %v208
    %v228 = vpop.permute.xlu0 %227
    %231 = vset.pattern.permute.xlu0 0
    %232 = vperm.xlu0 %231, %v209
    %v233 = vpop.permute.xlu0 %232
    %vm235 = vcmask 261120
    %v237 = vsel %vm235, %v200, 0
    %v240 = vsel %vm235, %v201, 0
    %v243 = vsel %vm235, %v202, 0
    %v246 = vsel %vm235, %v203, 0
    %v249 = vsel %vm235, %v204, 0
    %251 = vmatprep.subr.mxu0 %v193
    %252 = vmatpush1.msra.mxu0 %v192
    %253 = vmatprep.subr.mxu0 %v195
    %254 = vmatpush1.msra.mxu0 %v194
    %255 = vmatprep.subr.mxu0 %v197
    %256 = vmatpush1.msra.mxu0 %v196
    %257 = vmatprep.subr.mxu0 %v199
    %258 = vmatpush1.msra.mxu0 %v198
    %259 = vmatprep.subr.mxu0 0.0
    %260 = vmatpush1.msra.mxu0 0.0
    %261 = vmatprep.subr.mxu0 0.0
    %262 = vmatpush1.msra.mxu0 0.0
    %263 = vmatprep.subr.mxu0 0.0
    %264 = vmatpush1.msra.mxu0 0.0
    %265 = vmatprep.subr.mxu0 0.0
    %266 = vmatpush1.msra.mxu0 0.0
    %267 = vmatprep.subr.mxu0 0.0
    %268 = vmatpush1.msra.mxu0 0.0
    %269 = vmatprep.subr.mxu0 0.0
    %270 = vmatpush1.msra.mxu0 0.0
    %271 = vmatprep.subr.mxu0 0.0
    %272 = vmatpush1.msra.mxu0 0.0
    %273 = vmatprep.subr.mxu0 0.0
    %274 = vmatpush1.msra.mxu0 0.0
    %275 = vmatprep.subr.mxu0 0.0
    %276 = vmatpush1.msra.mxu0 0.0
    %277 = vmatprep.subr.mxu0 0.0
    %278 = vmatpush1.msra.mxu0 0.0
    %279 = vmatprep.subr.mxu0 0.0
    %280 = vmatpush1.msra.mxu0 0.0
    %281 = vmatprep.subr.mxu0 0.0
    %282 = vmatpush1.msra.mxu0 0.0
    %283 = vmatprep.subr.mxu0 0.0
    %284 = vmatpush1.msra.mxu0 0.0
    %285 = vmatprep.subr.mxu0 0.0
    %286 = vmatpush1.msra.mxu0 0.0
    %287 = vmatprep.subr.mxu0 0.0
    %288 = vmatpush1.msra.mxu0 0.0
    %289 = vmatprep.subr.mxu0 0.0
    %290 = vmatpush1.msra.mxu0 0.0
    %291 = vmatprep.subr.mxu0 0.0
    %292 = vmatpush1.msra.mxu0 0.0
    %293 = vmatprep.subr.mxu0 0.0
    %294 = vmatpush1.msra.mxu0 0.0
    %295 = vmatprep.subr.mxu0 0.0
    %296 = vmatpush1.msra.mxu0 0.0
    %297 = vmatprep.subr.mxu0 0.0
    %298 = vmatpush1.msra.mxu0 0.0
    %299 = vmatprep.subr.mxu0 0.0
    %300 = vmatpush1.msra.mxu0 0.0
    %301 = vmatprep.subr.mxu0 0.0
    %302 = vmatpush1.msra.mxu0 0.0
    %303 = vmatprep.subr.mxu0 0.0
    %304 = vmatpush1.msra.mxu0 0.0
    %305 = vmatprep.subr.mxu0 0.0
    %306 = vmatpush1.msra.mxu0 0.0
    %307 = vmatprep.subr.mxu0 0.0
    %308 = vmatpush1.msra.mxu0 0.0
    %309 = vmatprep.subr.mxu0 0.0
    %310 = vmatpush1.msra.mxu0 0.0
    %311 = vmatprep.subr.mxu0 0.0
    %312 = vmatpush1.msra.mxu0 0.0
    %313 = vmatprep.subr.mxu0 0.0
    %314 = vmatpush1.msra.mxu0 0.0
    %315 = vmatprep.mubr.f32.mxu0 0.0
    %316 = vmatmul.mubr.f32.gmra.mrb[0].mxu0 %v237
    %v317 = vpop.f32.mrb[0].mxu0
    %v318 = vadd.f32 %v213, %v317
    %v319 = vpop.f32.mrb[0].mxu0
    %v320 = vadd.f32 %v213, %v319
    %321 = vmatprep.mubr.f32.mxu0 0.0
    %322 = vmatmul.mubr.f32.gmra.mrb[0].mxu0 %v240
    %v323 = vpop.f32.mrb[0].mxu0
    %v324 = vadd.f32 %v218, %v323
    %v325 = vpop.f32.mrb[0].mxu0
    %v326 = vadd.f32 %v218, %v325
    %327 = vmatprep.mubr.f32.mxu0 0.0
    %328 = vmatmul.mubr.f32.gmra.mrb[0].mxu0 %v243
    %v329 = vpop.f32.mrb[0].mxu0
    %v330 = vadd.f32 %v223, %v329
    %v331 = vpop.f32.mrb[0].mxu0
    %v332 = vadd.f32 %v223, %v331
    %333 = vmatprep.mubr.f32.mxu0 0.0
    %334 = vmatmul.mubr.f32.gmra.mrb[0].mxu0 %v246
    %v335 = vpop.f32.mrb[0].mxu0
    %v336 = vadd.f32 %v228, %v335
    %v337 = vpop.f32.mrb[0].mxu0
    %v338 = vadd.f32 %v228, %v337
    %339 = vmatprep.mubr.f32.mxu0 0.0
    %340 = vmatmul.mubr.f32.gmra.mrb[0].mxu0 %v249
    %v341 = vpop.f32.mrb[0].mxu0
    %v342 = vadd.f32 %v233, %v341
    %v343 = vpop.f32.mrb[0].mxu0
    %v344 = vadd.f32 %v233, %v343
    %345 = vdwg.mxu0
    %346 = vst [vmem:[#allocation2] sm:$0xff] %v318
    %347 = vst [vmem:[#allocation2 + $0x8] sm:$0xff] %v320
    %348 = vst [vmem:[#allocation2 + $0x10] sm:$0xff] %v324
    %349 = vst [vmem:[#allocation2 + $0x18] sm:$0xff] %v326
    %350 = vst [vmem:[#allocation2 + $0x20] sm:$0xff] %v330
    %351 = vst [vmem:[#allocation2 + $0x28] sm:$0xff] %v332
    %352 = vst [vmem:[#allocation2 + $0x30] sm:$0xff] %v336
    %353 = vst [vmem:[#allocation2 + $0x38] sm:$0xff] %v338
    %354 = vst [vmem:[#allocation2 + $0x40] sm:$0xff] %v342
    %355 = vst [vmem:[#allocation2 + $0x48] sm:$0xff] %v344
    // Predicated region
    $region26: #{tpu_custom_call.1} parent=1 // pred_check
      _
    $region27: #{tpu_custom_call.1} parent=1 // pred_check_branch
      %357 = sbr.rel (0) target = $region29
    $region28: #{tpu_custom_call.1} parent=1 // pred_region
      %s359 = ssub.s32 1280, 1280
      %360 = vsyncadd [#allocation3], %s359
      %s361 = sshll.u32 [#allocation2], 4
      %s362 = int_to_ptr.vmem [resolvable:$true] %s361
      %367 = dma.vmem_to_hbm [thread:$0]  %s362, 1280, %s6, [#allocation3], 256, 256, 16
    $region29: #{tpu_custom_call.1} parent=1 // pred_fallthru
      _
    // Predicated region
    $region30: #{tpu_custom_call.1} parent=1 // pred_check
      _
    $region31: #{tpu_custom_call.1} parent=1 // pred_check_branch
      %369 = sbr.rel (0) target = $region33
    $region32: #{tpu_custom_call.1} parent=1 // pred_region
      %370 = dma.done [#allocation3], 1280
    $region33: #{tpu_custom_call.1} parent=1 // pred_fallthru
      _
    %371 = vsyncpa [#allocation3], 1

</llo_original>
